<compile_context>
chip_gen: v7x
topology: tpu7x:2x2x1
jax: 0.10.0
libtpu: 0.0.40
codegen_flags: <defaults>
</compile_context>

<pallas_src>
import functools

import jax
import jax.numpy as jnp
import numpy as np
from jax.experimental import pallas as pl
from jax.experimental.pallas import tpu as pltpu

try:  # prefer scipy's exact LAP solver when present
    from scipy.optimize import linear_sum_assignment as _scipy_lsa
except Exception:  # pragma: no cover - scipy not installed
    _scipy_lsa = None

_EPS = 1e-9


def _round_up(x, m):
    return ((x + m - 1) // m) * m


def _choose_block(dim, align, max_block):
    """Block size: aligned, <= max_block, with padding overshoot < align."""
    dim = max(int(dim), 1)
    aligned = _round_up(dim, align)
    if aligned <= max_block:
        return aligned
    n_blocks = -(-dim // max_block)                 # ceil(dim / max_block)
    return _round_up(-(-dim // n_blocks), align)    # ceil(dim / n_blocks), aligned


def _tensorcores_per_chip():
    """Best-effort detection of 2-TC chips (v7x); defaults to 1."""
    try:
        kind = jax.devices()[0].device_kind.lower()
    except Exception:  # pragma: no cover
        return 1
    return 2 if ("v7" in kind or "7x" in kind) else 1


_TC_PER_CHIP = _tensorcores_per_chip()


# --------------------------------------------------------------------------- #
# Pallas kernel: one (blk_n x blk_m) tile of the cost matrix.
# --------------------------------------------------------------------------- #
def _cost_kernel(pred_ref, tgt_ref, c_ref, *, w_boxes_k, w_giou):
    pred = pred_ref[...]     # [blk_n, 8] = (reg_x, reg_y, x0, y0, x1, y1, area, _)
    tgt = tgt_ref[...]       # [8, blk_m] = (reg_x, reg_y, x0, y0, x1, y1, area, _)

    reg_x, reg_y = pred[:, 0:1], pred[:, 1:2]                    # [blk_n, 1]
    p_x0, p_y0 = pred[:, 2:3], pred[:, 3:4]
    p_x1, p_y1 = pred[:, 4:5], pred[:, 5:6]
    area1 = pred[:, 6:7]                                         # precomputed

    t_reg_x, t_reg_y = tgt[0:1, :], tgt[1:2, :]                  # [1, blk_m]
    t_x0, t_y0 = tgt[2:3, :], tgt[3:4, :]
    t_x1, t_y1 = tgt[4:5, :], tgt[5:6, :]
    area2 = tgt[6:7, :]                                          # precomputed

    # ---- box-regression cost: pairwise L1 (reg pre-scaled by w_boxes) -------
    cost_boxes = jnp.abs(reg_x - t_reg_x) + jnp.abs(reg_y - t_reg_y)
    if w_boxes_k != 1.0:     # only when w_boxes < 0 (could not be pre-scaled)
        cost_boxes = w_boxes_k * cost_boxes

    # ---- generalized IoU (constant terms dropped — LAP-invariant) -----------
    iw = jnp.maximum(jnp.minimum(p_x1, t_x1) - jnp.maximum(p_x0, t_x0), 0.0)
    ih = jnp.maximum(jnp.minimum(p_y1, t_y1) - jnp.maximum(p_y0, t_y0), 0.0)
    inter = iw * ih                                              # [n, m]
    union = area1 + area2 - inter                                # [n, m]
    r_u = pl.reciprocal(union + _EPS, approx=True)               # EUP vrcp
    iou = inter * r_u

    # Enclosing extent is non-negative for valid / zero-padded boxes: no clamp.
    ew = jnp.maximum(p_x1, t_x1) - jnp.minimum(p_x0, t_x0)
    eh = jnp.maximum(p_y1, t_y1) - jnp.minimum(p_y0, t_y0)
    r_e = pl.reciprocal(ew * eh + _EPS, approx=True)             # EUP vrcp

    # giou = iou - (enclose - union)/enclose = (iou + union/enclose) - 1.
    # The -1 (and the constant classification cost -w_labels: softmax of a
    # single logit is identically 1) are global offsets — dropped.
    giou_core = iou + union * r_e

    c_ref[...] = (cost_boxes - w_giou * giou_core).astype(c_ref.dtype)


# --------------------------------------------------------------------------- #
# Jitted wrapper: pack / pad, launch gridded kernel, slice + reshape on device.
# --------------------------------------------------------------------------- #
@functools.partial(jax.jit,
                   static_argnames=("cost_labels", "cost_boxes", "cost_giou"))
def _compute_cost_matrix(pred_reg, pred_boxes, tgt_reg, tgt_boxes, *,
                         cost_labels, cost_boxes, cost_giou):
    """Returns the un-padded cost matrix C [B, Q, M] (up to a global offset)."""
    del cost_labels  # constant classification term (single logit) is dropped
    B, Q, _ = pred_reg.shape
    N = B * Q
    M = int(tgt_reg.shape[0])

    blk_n = _choose_block(N, 8, 512)
    blk_m = _choose_block(M, 128, 1024)
    N_pad = _round_up(N, blk_n)
    M_pad = _round_up(M, blk_m)

    # v7x (2 TC/chip): make sure a "parallel" axis has >= 2 grid steps.
    if _TC_PER_CHIP >= 2 and (N_pad // blk_n) * (M_pad // blk_m) < 2 and blk_n > 8:
        blk_n = _round_up(max(blk_n // 2, 8), 8)
        N_pad = _round_up(N, blk_n)

    w_b = float(cost_boxes)
    prescale = w_b >= 0.0                    # |w*a - w*b| == w*|a-b| only if w>=0
    reg_scale = w_b if prescale else 1.0
    w_boxes_k = 1.0 if prescale else w_b

    # Pack predictions: [N, 7] -> [N_pad, 8]   (reg*, boxes, area1)
    p_reg = pred_reg.reshape(N, 2).astype(jnp.float32)
    if reg_scale != 1.0:
        p_reg = p_reg * reg_scale
    p_box = pred_boxes.reshape(N, 4).astype(jnp.float32)
    area1 = (p_box[:, 2:3] - p_box[:, 0:1]) * (p_box[:, 3:4] - p_box[:, 1:2])
    pred_packed = jnp.concatenate([p_reg, p_box, area1], axis=-1)
    pred_packed = jnp.pad(pred_packed, ((0, N_pad - N), (0, 1)))

    # Pack targets (M on the lane axis): [7, M] -> [8, M_pad]
    t_reg = tgt_reg.astype(jnp.float32)
    if reg_scale != 1.0:
        t_reg = t_reg * reg_scale
    t_box = tgt_boxes.astype(jnp.float32)
    area2 = (t_box[:, 2:3] - t_box[:, 0:1]) * (t_box[:, 3:4] - t_box[:, 1:2])
    tgt_packed = jnp.concatenate([t_reg, t_box, area2], axis=-1).T
    tgt_packed = jnp.pad(tgt_packed, ((0, 1), (0, M_pad - M)))

    kernel = functools.partial(_cost_kernel,
                               w_boxes_k=float(w_boxes_k),
                               w_giou=float(cost_giou))

    grid = (N_pad // blk_n, M_pad // blk_m)

    c_pad = pl.pallas_call(
        kernel,
        out_shape=jax.ShapeDtypeStruct((N_pad, M_pad), jnp.float32),
        grid=grid,
        in_specs=[
            pl.BlockSpec((blk_n, 8), lambda i, j: (i, 0)),   # prediction rows
            pl.BlockSpec((8, blk_m), lambda i, j: (0, j)),   # target columns
        ],
        out_specs=pl.BlockSpec((blk_n, blk_m), lambda i, j: (i, j)),
        compiler_params=pltpu.CompilerParams(
            dimension_semantics=("parallel", "parallel"),
            vmem_limit_bytes=32 * 1024 * 1024,
        ),
        cost_estimate=pl.CostEstimate(
            flops=int(25 * N_pad * M_pad),
            transcendentals=int(2 * N_pad * M_pad),
            bytes_accessed=int(4 * (N_pad * M_pad + 8 * N_pad + 8 * M_pad)),
        ),
    )(pred_packed, tgt_packed)

    # Device-side slice + reshape: only the real N x M entries ever leave HBM.
    return c_pad[:N, :M].reshape(B, Q, M)


# --------------------------------------------------------------------------- #
# Host-side linear sum assignment (exact, O(n^3), rectangular).
# --------------------------------------------------------------------------- #
def _linear_sum_assignment_np(cost):
    """Exact min-cost rectangular assignment (Jonker-Volgenant / e-maxx)."""
    cost = np.asarray(cost, dtype=np.float64)
    nr, nc = cost.shape
    if nr == 0 or nc == 0:
        return np.zeros(0, np.int64), np.zeros(0, np.int64)

    transposed = nr > nc            # algorithm wants rows <= cols
    A = cost.T if transposed else cost
    n, m = A.shape                  # n <= m
    INF = float("inf")

    u = np.zeros(n + 1)
    v = np.zeros(m + 1)
    p = np.zeros(m + 1, dtype=np.int64)     # p[j]: row assigned to column j (1-idx)
    way = np.zeros(m + 1, dtype=np.int64)

    for i in range(1, n + 1):
        p[0] = i
        j0 = 0
        minv = np.full(m + 1, INF)
        used = np.zeros(m + 1, dtype=bool)
        while True:
            used[j0] = True
            i0 = p[j0]
            delta = INF
            j1 = 0
            for j in range(1, m + 1):
                if not used[j]:
                    cur = A[i0 - 1, j - 1] - u[i0] - v[j]
                    if cur < minv[j]:
                        minv[j] = cur
                        way[j] = j0
                    if minv[j] < delta:
                        delta = minv[j]
                        j1 = j
            for j in range(m + 1):
                if used[j]:
                    u[p[j]] += delta
                    v[j] -= delta
                else:
                    minv[j] -= delta
            j0 = j1
            if p[j0] == 0:
                break
        while True:
            j1 = way[j0]
            p[j0] = p[j1]
            j0 = j1
            if j0 == 0:
                break

    rows_a, cols_a = [], []
    for j in range(1, m + 1):
        if p[j] != 0:
            rows_a.append(p[j] - 1)
            cols_a.append(j - 1)
    rows_a = np.asarray(rows_a, dtype=np.int64)
    cols_a = np.asarray(cols_a, dtype=np.int64)

    if transposed:
        r, c = cols_a, rows_a
    else:
        r, c = rows_a, cols_a
    order = np.argsort(r)
    return r[order], c[order]


def _linear_sum_assignment(cost):
    if _scipy_lsa is not None:
        r, c = _scipy_lsa(np.asarray(cost))
        return np.asarray(r, np.int64), np.asarray(c, np.int64)
    return _linear_sum_assignment_np(cost)


# --------------------------------------------------------------------------- #
# HungarianMatcher
# --------------------------------------------------------------------------- #
class HungarianMatcher:
    def __init__(self, cost_labels=1.0, cost_boxes=1.0, cost_giou=1.0):
        assert cost_labels != 0 or cost_boxes != 0 or cost_giou != 0, \
            'all costs can not be zero'
        self.cost_labels = cost_labels
        self.cost_boxes = cost_boxes
        self.cost_giou = cost_giou

    def __call__(self, outputs, targets):
        pred_cls = outputs['pred_cls']
        pred_reg = outputs['pred_reg']
        pred_boxes = outputs['pred_boxes']
        tgt_reg = targets['target_reg']
        tgt_boxes = targets['target_boxes']
        tgt_size = targets['target_size']
        assert sum(tgt_size) == tgt_reg.shape[0] == tgt_boxes.shape[0], \
            'The number of targets must be aligned with the regression.'

        B, Q, C_cls = pred_cls.shape
        assert C_cls == 1, \
            "HungarianMatcher cost expects a single-class logit (C == 1)."

        total_obj = int(sum(int(s) for s in tgt_size))
        if total_obj == 0:
            empty = jnp.zeros((0,), dtype=jnp.int32)
            return [(empty, empty) for _ in range(B)]

        C = _compute_cost_matrix(
            pred_reg, pred_boxes, tgt_reg, tgt_boxes,
            cost_labels=float(self.cost_labels),
            cost_boxes=float(self.cost_boxes),
            cost_giou=float(self.cost_giou))

        # Single D2H transfer of exactly B*Q*M floats (already sliced on device).
        C_np = np.asarray(jax.device_get(C))

        index_list = []
        col_off = 0
        for b in range(B):
            sz = int(tgt_size[b])
            i, j = _linear_sum_assignment(C_np[b, :, col_off:col_off + sz])
            # NOTE: jax default has x64 disabled; indices are returned as int32.
            index_list.append((jnp.asarray(i, dtype=jnp.int32),
                               jnp.asarray(j, dtype=jnp.int32)))
            col_off += sz
        return index_list


if __name__ == "__main__":
    key = jax.random.PRNGKey(0)
    B, Q = 2, 8
    tgt_size = [2, 3]
    num_obj = sum(tgt_size)

    k1, k2, k3, k4, k5, k6, k7 = jax.random.split(key, 7)

    pred_cls = jax.random.normal(k1, (B, Q, 1), dtype=jnp.float32)
    pred_reg = jax.random.normal(k2, (B, Q, 2), dtype=jnp.float32)

    # Valid [x0, y0, x1, y1] boxes for predictions and targets.
    p_xy = jax.random.uniform(k3, (B, Q, 2), minval=0.0, maxval=0.5)
    p_wh = jax.random.uniform(k4, (B, Q, 2), minval=0.05, maxval=0.5)
    pred_boxes = jnp.concatenate([p_xy, p_xy + p_wh], axis=-1)

    t_xy = jax.random.uniform(k5, (num_obj, 2), minval=0.0, maxval=0.5)
    t_wh = jax.random.uniform(k6, (num_obj, 2), minval=0.05, maxval=0.5)
    target_boxes = jnp.concatenate([t_xy, t_xy + t_wh], axis=-1)
    target_reg = jax.random.normal(k7, (num_obj, 2), dtype=jnp.float32)

    outputs = {'pred_cls': pred_cls, 'pred_reg': pred_reg, 'pred_boxes': pred_boxes}
    targets = {'target_reg': target_reg, 'target_boxes': target_boxes,
               'target_size': tgt_size}

    matcher = HungarianMatcher(cost_labels=1.0, cost_boxes=1.0, cost_giou=1.0)
    indices = matcher(outputs, targets)

    # Sanity checks on the output structure.
    assert len(indices) == B
    for (i, j), sz in zip(indices, tgt_size):
        assert i.shape[0] == j.shape[0] == min(Q, sz)
        assert np.all(np.asarray(i) >= 0) and np.all(np.asarray(i) < Q)
        assert np.all(np.asarray(j) >= 0) and np.all(np.asarray(j) < sz)
        jax.block_until_ready(i)
        jax.block_until_ready(j)

    print("KERNEL_OK")
</pallas_src>

<mosaic_0001>
module attributes {stable_mosaic.version = 11 : i64} {
  func.func @_cost_kernel(%arg0: i32, %arg1: i32, %arg2: memref<16x8xf32, #tpu.memory_space<vmem>>, %arg3: memref<8x128xf32, #tpu.memory_space<vmem>>, %arg4: memref<16x128xf32, #tpu.memory_space<vmem>>) attributes {dimension_semantics = [#tpu.dimension_semantics<parallel>, #tpu.dimension_semantics<parallel>], iteration_bounds = array<i64: 1, 1>, scalar_prefetch = 0 : i64, scratch_operands = 0 : i64, tpu.core_type = #tpu.core_type<tc>, window_params = [{transform_indices = @transform_0, window_bounds = array<i64: 16, 8>}, {transform_indices = @transform_1, window_bounds = array<i64: 8, 128>}, {transform_indices = @transform_2, window_bounds = array<i64: 16, 128>}]} {
    %c0 = arith.constant 0 : index
    %c0_0 = arith.constant 0 : index
    %0 = vector.load %arg2[%c0, %c0_0] : memref<16x8xf32, #tpu.memory_space<vmem>>, vector<16x8xf32>
    %c0_1 = arith.constant 0 : index
    %c0_2 = arith.constant 0 : index
    %1 = vector.load %arg3[%c0_1, %c0_2] : memref<8x128xf32, #tpu.memory_space<vmem>>, vector<8x128xf32>
    %2 = vector.extract_strided_slice %0 {offsets = [0, 0], sizes = [16, 1], strides = [1, 1]} : vector<16x8xf32> to vector<16x1xf32>
    %3 = vector.extract_strided_slice %0 {offsets = [0, 1], sizes = [16, 1], strides = [1, 1]} : vector<16x8xf32> to vector<16x1xf32>
    %4 = vector.extract_strided_slice %0 {offsets = [0, 2], sizes = [16, 1], strides = [1, 1]} : vector<16x8xf32> to vector<16x1xf32>
    %5 = vector.extract_strided_slice %0 {offsets = [0, 3], sizes = [16, 1], strides = [1, 1]} : vector<16x8xf32> to vector<16x1xf32>
    %6 = vector.extract_strided_slice %0 {offsets = [0, 4], sizes = [16, 1], strides = [1, 1]} : vector<16x8xf32> to vector<16x1xf32>
    %7 = vector.extract_strided_slice %0 {offsets = [0, 5], sizes = [16, 1], strides = [1, 1]} : vector<16x8xf32> to vector<16x1xf32>
    %8 = vector.extract_strided_slice %0 {offsets = [0, 6], sizes = [16, 1], strides = [1, 1]} : vector<16x8xf32> to vector<16x1xf32>
    %9 = vector.extract_strided_slice %1 {offsets = [0, 0], sizes = [1, 128], strides = [1, 1]} : vector<8x128xf32> to vector<1x128xf32>
    %10 = vector.extract_strided_slice %1 {offsets = [1, 0], sizes = [1, 128], strides = [1, 1]} : vector<8x128xf32> to vector<1x128xf32>
    %11 = vector.extract_strided_slice %1 {offsets = [2, 0], sizes = [1, 128], strides = [1, 1]} : vector<8x128xf32> to vector<1x128xf32>
    %12 = vector.extract_strided_slice %1 {offsets = [3, 0], sizes = [1, 128], strides = [1, 1]} : vector<8x128xf32> to vector<1x128xf32>
    %13 = vector.extract_strided_slice %1 {offsets = [4, 0], sizes = [1, 128], strides = [1, 1]} : vector<8x128xf32> to vector<1x128xf32>
    %14 = vector.extract_strided_slice %1 {offsets = [5, 0], sizes = [1, 128], strides = [1, 1]} : vector<8x128xf32> to vector<1x128xf32>
    %15 = vector.extract_strided_slice %1 {offsets = [6, 0], sizes = [1, 128], strides = [1, 1]} : vector<8x128xf32> to vector<1x128xf32>
    %16 = vector.broadcast %2 : vector<16x1xf32> to vector<16x128xf32>
    %17 = vector.broadcast %9 : vector<1x128xf32> to vector<16x128xf32>
    %18 = arith.subf %16, %17 : vector<16x128xf32>
    %19 = math.absf %18 : vector<16x128xf32>
    %20 = vector.broadcast %3 : vector<16x1xf32> to vector<16x128xf32>
    %21 = vector.broadcast %10 : vector<1x128xf32> to vector<16x128xf32>
    %22 = arith.subf %20, %21 : vector<16x128xf32>
    %23 = math.absf %22 : vector<16x128xf32>
    %24 = arith.addf %19, %23 : vector<16x128xf32>
    %25 = vector.broadcast %6 : vector<16x1xf32> to vector<16x128xf32>
    %26 = vector.broadcast %13 : vector<1x128xf32> to vector<16x128xf32>
    %27 = arith.minimumf %25, %26 : vector<16x128xf32>
    %28 = vector.broadcast %4 : vector<16x1xf32> to vector<16x128xf32>
    %29 = vector.broadcast %11 : vector<1x128xf32> to vector<16x128xf32>
    %30 = arith.maximumf %28, %29 : vector<16x128xf32>
    %31 = arith.subf %27, %30 : vector<16x128xf32>
    %cst = arith.constant 0.000000e+00 : f32
    %32 = vector.broadcast %cst : f32 to vector<16x128xf32>
    %33 = arith.maximumf %31, %32 : vector<16x128xf32>
    %34 = vector.broadcast %7 : vector<16x1xf32> to vector<16x128xf32>
    %35 = vector.broadcast %14 : vector<1x128xf32> to vector<16x128xf32>
    %36 = arith.minimumf %34, %35 : vector<16x128xf32>
    %37 = vector.broadcast %5 : vector<16x1xf32> to vector<16x128xf32>
    %38 = vector.broadcast %12 : vector<1x128xf32> to vector<16x128xf32>
    %39 = arith.maximumf %37, %38 : vector<16x128xf32>
    %40 = arith.subf %36, %39 : vector<16x128xf32>
    %cst_3 = arith.constant 0.000000e+00 : f32
    %41 = vector.broadcast %cst_3 : f32 to vector<16x128xf32>
    %42 = arith.maximumf %40, %41 : vector<16x128xf32>
    %43 = arith.mulf %33, %42 : vector<16x128xf32>
    %44 = vector.broadcast %8 : vector<16x1xf32> to vector<16x128xf32>
    %45 = vector.broadcast %15 : vector<1x128xf32> to vector<16x128xf32>
    %46 = arith.addf %44, %45 : vector<16x128xf32>
    %47 = arith.subf %46, %43 : vector<16x128xf32>
    %cst_4 = arith.constant 9.99999971E-10 : f32
    %48 = vector.broadcast %cst_4 : f32 to vector<16x128xf32>
    %49 = arith.addf %47, %48 : vector<16x128xf32>
    %50 = tpu.reciprocal %49 {approx = true} : vector<16x128xf32> -> vector<16x128xf32>
    %51 = arith.mulf %43, %50 : vector<16x128xf32>
    %52 = vector.broadcast %6 : vector<16x1xf32> to vector<16x128xf32>
    %53 = vector.broadcast %13 : vector<1x128xf32> to vector<16x128xf32>
    %54 = arith.maximumf %52, %53 : vector<16x128xf32>
    %55 = vector.broadcast %4 : vector<16x1xf32> to vector<16x128xf32>
    %56 = vector.broadcast %11 : vector<1x128xf32> to vector<16x128xf32>
    %57 = arith.minimumf %55, %56 : vector<16x128xf32>
    %58 = arith.subf %54, %57 : vector<16x128xf32>
    %59 = vector.broadcast %7 : vector<16x1xf32> to vector<16x128xf32>
    %60 = vector.broadcast %14 : vector<1x128xf32> to vector<16x128xf32>
    %61 = arith.maximumf %59, %60 : vector<16x128xf32>
    %62 = vector.broadcast %5 : vector<16x1xf32> to vector<16x128xf32>
    %63 = vector.broadcast %12 : vector<1x128xf32> to vector<16x128xf32>
    %64 = arith.minimumf %62, %63 : vector<16x128xf32>
    %65 = arith.subf %61, %64 : vector<16x128xf32>
    %66 = arith.mulf %58, %65 : vector<16x128xf32>
    %cst_5 = arith.constant 9.99999971E-10 : f32
    %67 = vector.broadcast %cst_5 : f32 to vector<16x128xf32>
    %68 = arith.addf %66, %67 : vector<16x128xf32>
    %69 = tpu.reciprocal %68 {approx = true} : vector<16x128xf32> -> vector<16x128xf32>
    %70 = arith.mulf %47, %69 : vector<16x128xf32>
    %71 = arith.addf %51, %70 : vector<16x128xf32>
    %cst_6 = arith.constant 1.000000e+00 : f32
    %72 = vector.broadcast %cst_6 : f32 to vector<16x128xf32>
    %73 = arith.mulf %72, %71 : vector<16x128xf32>
    %74 = arith.subf %24, %73 : vector<16x128xf32>
    %c0_7 = arith.constant 0 : index
    %c0_8 = arith.constant 0 : index
    %75 = vector.load %arg4[%c0_7, %c0_8] : memref<16x128xf32, #tpu.memory_space<vmem>>, vector<16x128xf32>
    tpu.vector_store %arg4[%c0_7, %c0_8], %74 {strides = array<i32>} : memref<16x128xf32, #tpu.memory_space<vmem>>, vector<16x128xf32>,
    return
  }
  func.func @transform_0(%arg0: i32, %arg1: i32) -> (i32, i32) {
    %c0_i32 = arith.constant 0 : i32
    %c0_i32_0 = arith.constant 0 : i32
    return %arg0, %c0_i32 : i32, i32
  }
  func.func @transform_1(%arg0: i32, %arg1: i32) -> (i32, i32) {
    %c0_i32 = arith.constant 0 : i32
    %c0_i32_0 = arith.constant 0 : i32
    return %c0_i32, %arg1 : i32, i32
  }
  func.func @transform_2(%arg0: i32, %arg1: i32) -> (i32, i32) {
    %c0_i32 = arith.constant 0 : i32
    return %arg0, %arg1 : i32, i32
  }
}

</mosaic_0001>

<llo_original>
// kernel: _compute_cost_matrix.1
$region0: #{_compute_cost_matrix.1}
  #allocation0 [shape = 'u32[]', space=smem, size = 0x4, offset = 0x4, fixed_abs, tag = 'smem constant byte address 0x4 - core index']
  #allocation1 [shape = 'u32[144,128]{1,0:T(1,128)}', space=vmem, size = 0x12000, scoped, tag = 'internal scratch']
  %s0 = inlined_call_operand.vmem [shape: f32[16,8], index: 0, kind: input, shape index: {}]
  %s1 = inlined_call_operand.vmem [shape: f32[8,128], index: 1, kind: input, shape index: {}]
  %s2 = inlined_call_operand.vmem [shape: f32[16,128], index: 2, kind: output, shape index: {}]
  %s3 = sld [smem:[#allocation0]]
  $region18: #{_compute_cost_matrix.1} parent=0
    _
  %s5 = ssub.s32 1, %s3
  %s6 = scalar_select 0, %s5, %s3
  // Predicated region
  $region2: #{_compute_cost_matrix.1} parent=0 // pred_check
    _
  $region3: #{_compute_cost_matrix.1} parent=0 // pred_check_branch
    %8 = sbr.rel (0) target = $region5
  $region4: #{_compute_cost_matrix.1} parent=0 // pred_region
    _
  $region5: #{_compute_cost_matrix.1} parent=0 // pred_fallthru
    _
  // Predicated region
  $region6: #{_compute_cost_matrix.1} parent=0 // pred_check
    _
  $region7: #{_compute_cost_matrix.1} parent=0 // pred_check_branch
    %10 = sbr.rel (0) target = $region9
  $region8: #{_compute_cost_matrix.1} parent=0 // pred_region
    _
  $region9: #{_compute_cost_matrix.1} parent=0 // pred_fallthru
    _
  %v11 = vld [vmem:[%s0] sm:$0xff]
  %v12 = vld [vmem:[%s0 + $0x8] sm:$0xff]
  %v13 = vld [vmem:[%s1] sm:$0xff]
  %15 = vset.pattern.permute.xlu0 0
  %16 = vperm.xlu0 %15, %v11
  %v17 = vpop.permute.xlu0 %16
  %20 = vset.pattern.permute.xlu0 0
  %21 = vperm.xlu0 %20, %v12
  %v22 = vpop.permute.xlu0 %21
  %v24 = vlaneseq
  %v25 = vshrl.u32 %v24, 7
  %v26 = vsub.s32 0, %v25
  %v27 = vrot.slane %v13, %v26
  %v28 = vsub.f32 %v17, %v27
  %v29 = vsub.f32 %v22, %v27
  %v30 = vand.u32 2147483647, %v28
  %v31 = vand.u32 2147483647, %v29
  %32 = vset.pattern.permute.xlu0 1
  %33 = vperm.xlu0 %32, %v11
  %v34 = vpop.permute.xlu0 %33
  %36 = vset.pattern.permute.xlu0 1
  %37 = vperm.xlu0 %36, %v12
  %v38 = vpop.permute.xlu0 %37
  %v40 = vlaneseq
  %v41 = vshrl.u32 %v40, 7
  %v42 = vsub.s32 1, %v41
  %v43 = vrot.slane %v13, %v42
  %v44 = vsub.f32 %v34, %v43
  %v45 = vsub.f32 %v38, %v43
  %v46 = vand.u32 2147483647, %v44
  %v47 = vand.u32 2147483647, %v45
  %v48 = vadd.f32 %v30, %v46
  %v49 = vadd.f32 %v31, %v47
  %50 = vset.pattern.permute.xlu0 4
  %51 = vperm.xlu0 %50, %v11
  %v52 = vpop.permute.xlu0 %51
  %54 = vset.pattern.permute.xlu0 4
  %55 = vperm.xlu0 %54, %v12
  %v56 = vpop.permute.xlu0 %55
  %v58 = vlaneseq
  %v59 = vshrl.u32 %v58, 7
  %v60 = vsub.s32 4, %v59
  %v61 = vrot.slane %v13, %v60
  %v62 = vmin.f32 %v52, %v61
  %v63 = vmin.f32 %v56, %v61
  %64 = vset.pattern.permute.xlu0 2
  %65 = vperm.xlu0 %64, %v11
  %v66 = vpop.permute.xlu0 %65
  %68 = vset.pattern.permute.xlu0 2
  %69 = vperm.xlu0 %68, %v12
  %v70 = vpop.permute.xlu0 %69
  %v72 = vlaneseq
  %v73 = vshrl.u32 %v72, 7
  %v74 = vsub.s32 2, %v73
  %v75 = vrot.slane %v13, %v74
  %v76 = vmax.f32 %v66, %v75
  %v77 = vmax.f32 %v70, %v75
  %v78 = vsub.f32 %v62, %v76
  %v79 = vsub.f32 %v63, %v77
  %v80 = vmax.f32 %v78, 0.0
  %v81 = vmax.f32 %v79, 0.0
  %82 = vset.pattern.permute.xlu0 5
  %83 = vperm.xlu0 %82, %v11
  %v84 = vpop.permute.xlu0 %83
  %86 = vset.pattern.permute.xlu0 5
  %87 = vperm.xlu0 %86, %v12
  %v88 = vpop.permute.xlu0 %87
  %v90 = vlaneseq
  %v91 = vshrl.u32 %v90, 7
  %v92 = vsub.s32 5, %v91
  %v93 = vrot.slane %v13, %v92
  %v94 = vmin.f32 %v84, %v93
  %v95 = vmin.f32 %v88, %v93
  %96 = vset.pattern.permute.xlu0 3
  %97 = vperm.xlu0 %96, %v11
  %v98 = vpop.permute.xlu0 %97
  %100 = vset.pattern.permute.xlu0 3
  %101 = vperm.xlu0 %100, %v12
  %v102 = vpop.permute.xlu0 %101
  %v104 = vlaneseq
  %v105 = vshrl.u32 %v104, 7
  %v106 = vsub.s32 3, %v105
  %v107 = vrot.slane %v13, %v106
  %v108 = vmax.f32 %v98, %v107
  %v109 = vmax.f32 %v102, %v107
  %v110 = vsub.f32 %v94, %v108
  %v111 = vsub.f32 %v95, %v109
  %v112 = vmax.f32 %v110, 0.0
  %v113 = vmax.f32 %v111, 0.0
  %v114 = vmul.f32 %v80, %v112
  %v115 = vmul.f32 %v81, %v113
  %116 = vset.pattern.permute.xlu0 6
  %117 = vperm.xlu0 %116, %v11
  %v118 = vpop.permute.xlu0 %117
  %120 = vset.pattern.permute.xlu0 6
  %121 = vperm.xlu0 %120, %v12
  %v122 = vpop.permute.xlu0 %121
  %v124 = vlaneseq
  %v125 = vshrl.u32 %v124, 7
  %v126 = vsub.s32 6, %v125
  %v127 = vrot.slane %v13, %v126
  %v128 = vadd.f32 %v118, %v127
  %v129 = vadd.f32 %v122, %v127
  %v130 = vsub.f32 %v128, %v114
  %v131 = vsub.f32 %v129, %v115
  %v132 = vadd.f32 %v130, 1e-09
  %v133 = vadd.f32 %v131, 1e-09
  %v134 = vrcp.pop %v132
  %v135 = vrcp.pop %v133
  %v136 = vmul.f32 %v114, %v134
  %v137 = vmul.f32 %v115, %v135
  %v138 = vmax.f32 %v52, %v61
  %v139 = vmax.f32 %v56, %v61
  %v140 = vmin.f32 %v66, %v75
  %v141 = vmin.f32 %v70, %v75
  %v142 = vsub.f32 %v138, %v140
  %v143 = vsub.f32 %v139, %v141
  %v144 = vmax.f32 %v84, %v93
  %v145 = vmax.f32 %v88, %v93
  %v146 = vmin.f32 %v98, %v107
  %v147 = vmin.f32 %v102, %v107
  %v148 = vsub.f32 %v144, %v146
  %v149 = vsub.f32 %v145, %v147
  %v150 = vmul.f32 %v142, %v148
  %v151 = vmul.f32 %v143, %v149
  %v152 = vadd.f32 %v150, 1e-09
  %v153 = vadd.f32 %v151, 1e-09
  %v154 = vrcp.pop %v152
  %v155 = vrcp.pop %v153
  %v156 = vmul.f32 %v130, %v154
  %v157 = vmul.f32 %v131, %v155
  %v158 = vadd.f32 %v136, %v156
  %v159 = vadd.f32 %v137, %v157
  %v160 = vsub.f32 %v48, %v158
  %v161 = vsub.f32 %v49, %v159
  %162 = vst [vmem:[%s2] sm:$0xff] %v160
  %163 = vst [vmem:[%s2 + $0x8] sm:$0xff] %v161
  // Predicated region
  $region10: #{_compute_cost_matrix.1} parent=0 // pred_check
    _
  $region11: #{_compute_cost_matrix.1} parent=0 // pred_check_branch
    %165 = sbr.rel (0) target = $region13
  $region12: #{_compute_cost_matrix.1} parent=0 // pred_region
    _
  $region13: #{_compute_cost_matrix.1} parent=0 // pred_fallthru
    _
  // Predicated region
  $region14: #{_compute_cost_matrix.1} parent=0 // pred_check
    _
  $region15: #{_compute_cost_matrix.1} parent=0 // pred_check_branch
    %167 = sbr.rel (0) target = $region17
  $region16: #{_compute_cost_matrix.1} parent=0 // pred_region
    _
  $region17: #{_compute_cost_matrix.1} parent=0 // pred_fallthru
    _

</llo_original>
